<compile_context>
chip_gen: v5e
topology: v5e:2x2
jax: 0.10.0
libtpu: 0.0.40
codegen_flags: <defaults>
</compile_context>

<pallas_src>
import functools

import jax
import jax.numpy as jnp
import numpy as np
from jax import lax
from jax.experimental import pallas as pl
from jax.experimental.pallas import tpu as pltpu

_EPS = 1e-07

_MAX_TILE_N = 16384            # review #1: allow multi-MiB row tiles
_NUM_TENSORCORES = 2           # v7x megacore; harmless on 1-TC chips (v5e/v6e)
_MIN_TILE_INPUT_BYTES = 1 << 20  # don't shrink tiles below ~1 MiB just for balance
_F32_TEMPS_PER_ELEM = 3        # sigmoid(o), o*t, slack: f32 temporaries per element


def _round_up(x, m):
    return ((x + m - 1) // m) * m


def _round_down(x, m):
    return (x // m) * m


def _cdiv(a, b):
    return (a + b - 1) // b


def _vmem_limit_bytes():
    """Per-kernel VMEM limit derived from the chip (v7x has only 64 MiB/TC)."""
    try:
        cap = int(getattr(pltpu.get_tpu_info(), "vmem_capacity_bytes", 64 << 20))
    except Exception:
        cap = 64 << 20  # conservative: smallest current generation (v7x)
    return min(cap // 2, 64 << 20)  # v7x -> 32 MiB, v5e/v6e -> 64 MiB


def _sublane_multiple(*dtypes):
    """Native sublane packing multiple for the narrowest input dtype."""
    min_itemsize = min(jnp.dtype(d).itemsize for d in dtypes)
    return max(8, 32 // max(1, min_itemsize))  # f32 -> 8, bf16 -> 16, int8 -> 32


def _pick_tile_n(n, c, out_dtype, tgt_dtype, vmem_limit):
    """Largest row tile fitting the VMEM budget, balanced across TensorCores."""
    mult = _sublane_multiple(out_dtype, tgt_dtype)
    in_row = c * (jnp.dtype(out_dtype).itemsize + jnp.dtype(tgt_dtype).itemsize)
    # Double-buffered inputs + f32 temporaries the compiler keeps in VMEM.
    per_row = 2 * in_row + _F32_TEMPS_PER_ELEM * c * 4
    budget = (vmem_limit * 3) // 4           # headroom for compiler scratch
    cap = budget // per_row
    cap = max(mult, min(_round_down(cap, mult), _MAX_TILE_N))

    if n <= cap:
        # Whole batch fits in one tile. Split across 2 TCs only if each half
        # still moves >= ~1 MiB of input per grid step (review #6).
        half = _round_up(_cdiv(n, _NUM_TENSORCORES), mult)
        if _NUM_TENSORCORES > 1 and half < n and half * in_row >= _MIN_TILE_INPUT_BYTES:
            return min(half, cap)
        return n                              # block == full array dim (always legal)

    # Many tiles: round the tile count up to a multiple of the core count so
    # the parallel grid axis load-balances, as long as tiles stay large.
    num_tiles = _round_up(_cdiv(n, cap), _NUM_TENSORCORES)
    tile_n = min(cap, _round_up(_cdiv(n, num_tiles), mult))
    if tile_n * in_row < _MIN_TILE_INPUT_BYTES:
        tile_n = cap
    return max(mult, tile_n)


def _soft_jaccard_kernel(logits_ref, tgt_ref, part_ref, *, n_rows, needs_mask):
    """One (tile_n, C) row tile per grid step -> one per-tile partial loss sum.

    No cross-iteration state, so the grid axis is 'parallel'. Only the per-row
    loss of the trailing partial tile is masked (via select).
    """
    o = jax.nn.sigmoid(logits_ref[...].astype(jnp.float32))   # (tile_n, C)
    t = tgt_ref[...].astype(jnp.float32)                       # (tile_n, C)

    inter = jnp.sum(o * t, axis=1, keepdims=True)              # (tile_n, 1)
    # union = sum(o + t - o*t) == sum(o) + sum(t) - inter  (fewer full-tile passes)
    union = (jnp.sum(o, axis=1, keepdims=True)
             + jnp.sum(t, axis=1, keepdims=True)
             - inter)

    loss = 1.0 - (inter + _EPS) / (union + _EPS)                # (tile_n, 1)

    if needs_mask:
        # Trailing partial tile: out-of-bounds rows hold unspecified data
        # (possibly NaN). Use a SELECT so garbage is discarded (never loss*mask).
        tile_n = logits_ref.shape[0]
        row = (pl.program_id(0) * tile_n
               + lax.broadcasted_iota(jnp.int32, (tile_n, 1), 0))
        loss = jnp.where(row < n_rows, loss, 0.0)

    part = jnp.sum(loss)                                         # scalar partial sum
    # Lane/sublane-aligned (1, 8, 128) output block; wrapper reads [:, 0, 0].
    part_ref[...] = jnp.broadcast_to(part, part_ref.shape).astype(jnp.float32)


def soft_jaccard_loss(outputs, targets, *, tile_n=None):
    assert outputs.shape == targets.shape and outputs.ndim == 2
    n, c = outputs.shape
    vmem_limit = _vmem_limit_bytes()
    if tile_n is None:
        tile_n = _pick_tile_n(n, c, outputs.dtype, targets.dtype, vmem_limit)
    num_tiles = _cdiv(n, tile_n)
    needs_mask = (n % tile_n) != 0

    kernel = functools.partial(
        _soft_jaccard_kernel, n_rows=n, needs_mask=needs_mask
    )

    in_bytes = n * c * (jnp.dtype(outputs.dtype).itemsize
                        + jnp.dtype(targets.dtype).itemsize)
    cost = pl.CostEstimate(
        flops=6 * n * c,
        transcendentals=n * c,                         # sigmoid exp
        bytes_accessed=in_bytes + num_tiles * 8 * 128 * 4,
    )

    partials = pl.pallas_call(
        kernel,
        out_shape=jax.ShapeDtypeStruct((num_tiles, 8, 128), jnp.float32),
        grid_spec=pltpu.PrefetchScalarGridSpec(
            num_scalar_prefetch=0,
            grid=(num_tiles,),
            in_specs=[
                pl.BlockSpec((tile_n, c), lambda i: (i, 0)),
                pl.BlockSpec((tile_n, c), lambda i: (i, 0)),
            ],
            out_specs=pl.BlockSpec((1, 8, 128), lambda i: (i, 0, 0)),
        ),
        compiler_params=pltpu.CompilerParams(
            dimension_semantics=("parallel",),          # no cross-tile state -> megacore OK
            vmem_limit_bytes=vmem_limit,
        ),
        cost_estimate=cost,
    )(outputs, targets)

    total = jnp.sum(partials[:, 0, 0])
    return total / jnp.float32(n)


def _soft_jaccard_ref(outputs, targets):
    o = jax.nn.sigmoid(outputs.astype(jnp.float32))
    t = targets.astype(jnp.float32)
    inter = jnp.sum(o * t, axis=1)
    union = jnp.sum(o + t - o * t, axis=1)
    loss = 1.0 - (inter + _EPS) / (union + _EPS)
    return jnp.mean(loss)


if __name__ == "__main__":
    key = jax.random.PRNGKey(0)
    k1, k2 = jax.random.split(key)

    # AWA2-like shapes: batch=10, 85 binary attributes.
    N, C = 10, 85
    outputs = jax.random.normal(k1, (N, C), dtype=jnp.float32)              # logits
    targets = (jax.random.uniform(k2, (N, C)) > 0.5).astype(jnp.float32)    # binary labels

    ref = jax.block_until_ready(_soft_jaccard_ref(outputs, targets))

    # 1) Auto tile size: single full-dim tile, no masking.
    loss = jax.block_until_ready(soft_jaccard_loss(outputs, targets))
    assert np.allclose(np.asarray(loss), np.asarray(ref), rtol=1e-5, atol=1e-6), (loss, ref)

    # 2) Forced multi-tile path (grid=2, trailing partial tile masked by select).
    loss_tiled = jax.block_until_ready(soft_jaccard_loss(outputs, targets, tile_n=8))
    assert np.allclose(np.asarray(loss_tiled), np.asarray(ref), rtol=1e-5, atol=1e-6), (
        loss_tiled, ref)

    # 3) bf16 inputs (halves HBM traffic for this bandwidth-bound kernel); compute stays f32.
    ob = outputs.astype(jnp.bfloat16)
    tb = targets.astype(jnp.bfloat16)
    loss_bf16 = jax.block_until_ready(soft_jaccard_loss(ob, tb))
    ref_bf16 = jax.block_until_ready(_soft_jaccard_ref(ob, tb))
    assert np.allclose(np.asarray(loss_bf16), np.asarray(ref_bf16), rtol=1e-4, atol=1e-5), (
        loss_bf16, ref_bf16)

    print("KERNEL_OK")
</pallas_src>

<mosaic_0001>
module attributes {stable_mosaic.version = 11 : i64} {
  func.func @_soft_jaccard_kernel(%arg0: i32, %arg1: memref<10x85xf32, #tpu.memory_space<vmem>>, %arg2: memref<10x85xf32, #tpu.memory_space<vmem>>, %arg3: memref<1x8x128xf32, #tpu.memory_space<vmem>>) attributes {dimension_semantics = [#tpu.dimension_semantics<parallel>], iteration_bounds = array<i64: 1>, scalar_prefetch = 0 : i64, scratch_operands = 0 : i64, tpu.core_type = #tpu.core_type<tc>, window_params = [{transform_indices = @transform_0, window_bounds = array<i64: 10, 85>}, {transform_indices = @transform_1, window_bounds = array<i64: 10, 85>}, {transform_indices = @transform_2, window_bounds = array<i64: 1, 8, 128>}]} {
    %c0 = arith.constant 0 : index
    %c0_0 = arith.constant 0 : index
    %0 = vector.load %arg1[%c0, %c0_0] : memref<10x85xf32, #tpu.memory_space<vmem>>, vector<10x85xf32>
    %1 = arith.negf %0 : vector<10x85xf32>
    %2 = math.exp %1 : vector<10x85xf32>
    %cst = arith.constant 1.000000e+00 : f32
    %3 = vector.broadcast %cst : f32 to vector<10x85xf32>
    %4 = arith.addf %3, %2 : vector<10x85xf32>
    %5 = arith.divf %3, %4 : vector<10x85xf32>
    %c0_1 = arith.constant 0 : index
    %c0_2 = arith.constant 0 : index
    %6 = vector.load %arg2[%c0_1, %c0_2] : memref<10x85xf32, #tpu.memory_space<vmem>>, vector<10x85xf32>
    %7 = arith.mulf %5, %6 : vector<10x85xf32>
    %cst_3 = arith.constant dense<0.000000e+00> : vector<10xf32>
    %8 = vector.multi_reduction <add>, %7, %cst_3 [1] : vector<10x85xf32> to vector<10xf32>
    %9 = vector.shape_cast %8 : vector<10xf32> to vector<10x1xf32>
    %cst_4 = arith.constant dense<0.000000e+00> : vector<10xf32>
    %10 = vector.multi_reduction <add>, %5, %cst_4 [1] : vector<10x85xf32> to vector<10xf32>
    %11 = vector.shape_cast %10 : vector<10xf32> to vector<10x1xf32>
    %cst_5 = arith.constant dense<0.000000e+00> : vector<10xf32>
    %12 = vector.multi_reduction <add>, %6, %cst_5 [1] : vector<10x85xf32> to vector<10xf32>
    %13 = vector.shape_cast %12 : vector<10xf32> to vector<10x1xf32>
    %14 = arith.addf %11, %13 : vector<10x1xf32>
    %15 = arith.subf %14, %9 : vector<10x1xf32>
    %cst_6 = arith.constant 1.000000e-07 : f32
    %16 = vector.broadcast %cst_6 : f32 to vector<10x1xf32>
    %17 = arith.addf %9, %16 : vector<10x1xf32>
    %cst_7 = arith.constant 1.000000e-07 : f32
    %18 = vector.broadcast %cst_7 : f32 to vector<10x1xf32>
    %19 = arith.addf %15, %18 : vector<10x1xf32>
    %20 = arith.divf %17, %19 : vector<10x1xf32>
    %cst_8 = arith.constant 1.000000e+00 : f32
    %21 = vector.broadcast %cst_8 : f32 to vector<10x1xf32>
    %22 = arith.subf %21, %20 : vector<10x1xf32>
    %23 = vector.shape_cast %22 : vector<10x1xf32> to vector<1x10x1xf32>
    %cst_9 = arith.constant dense<0.000000e+00> : vector<1xf32>
    %24 = vector.multi_reduction <add>, %23, %cst_9 [1, 2] : vector<1x10x1xf32> to vector<1xf32>
    %25 = vector.shape_cast %24 : vector<1xf32> to vector<1x1x1xf32>
    %26 = vector.extract %25[0, 0, 0] : f32 from vector<1x1x1xf32>
    %27 = vector.broadcast %26 : f32 to vector<1x8x128xf32>
    %c0_10 = arith.constant 0 : index
    %c0_11 = arith.constant 0 : index
    %c0_12 = arith.constant 0 : index
    %28 = vector.load %arg3[%c0_10, %c0_11, %c0_12] : memref<1x8x128xf32, #tpu.memory_space<vmem>>, vector<1x8x128xf32>
    tpu.vector_store %arg3[%c0_10, %c0_11, %c0_12], %27 {strides = array<i32>} : memref<1x8x128xf32, #tpu.memory_space<vmem>>, vector<1x8x128xf32>,
    return
  }
  func.func @transform_0(%arg0: i32) -> (i32, i32) {
    %c0_i32 = arith.constant 0 : i32
    %c0_i32_0 = arith.constant 0 : i32
    return %arg0, %c0_i32 : i32, i32
  }
  func.func @transform_1(%arg0: i32) -> (i32, i32) {
    %c0_i32 = arith.constant 0 : i32
    %c0_i32_0 = arith.constant 0 : i32
    return %arg0, %c0_i32 : i32, i32
  }
  func.func @transform_2(%arg0: i32) -> (i32, i32, i32) {
    %c0_i32 = arith.constant 0 : i32
    %c0_i32_0 = arith.constant 0 : i32
    %c0_i32_1 = arith.constant 0 : i32
    return %arg0, %c0_i32, %c0_i32_0 : i32, i32, i32
  }
}

</mosaic_0001>

<llo_original>
// kernel: tpu_custom_call.1
$region0: #{tpu_custom_call.1}
  #allocation0 [shape = 'u32[]', space=smem, size = 0x4, offset = 0x4, fixed_abs, tag = 'smem constant byte address 0x4 - core index']
  #allocation1 [shape = 'u32[72,128]{1,0:T(1,128)}', space=vmem, size = 0x9000, scoped, tag = 'internal scratch']
  %s0 = inlined_call_operand.hbm [shape: f32[10,85], index: 0, kind: input, shape index: {}]
  %s1 = inlined_call_operand.hbm [shape: f32[10,85], index: 1, kind: input, shape index: {}]
  %s2 = inlined_call_operand.hbm [shape: f32[1,8,128], index: 2, kind: output, shape index: {}]
  %s3 = sld [smem:[#allocation0]]
  $region26: #{tpu_custom_call.1} parent=0
    _
  %s5 = ssub.s32 1, %s3
  %s6 = scalar_select 0, %s5, %s3
  $region1: #{tpu_custom_call.1} parent=0
    #allocation2 [shape = 'u8[8192]{0}', space=vmem, size = 0x2000, scoped, tag = 'input window, operand 0, single buffered']
    #allocation3 [shape = 's32[1]{0}', space=sflag, size = 0x4, scoped, tag = 'scoped memory for tpu_custom_call.1']
    #allocation4 [shape = 's32[1]{0}', space=sflag, size = 0x4, scoped, tag = 'scoped memory for tpu_custom_call.1']
    #allocation5 [shape = 'u8[8192]{0}', space=vmem, size = 0x2000, scoped, tag = 'input window, operand 1, single buffered']
    #allocation6 [shape = 's32[1]{0}', space=sflag, size = 0x4, scoped, tag = 'scoped memory for tpu_custom_call.1']
    #allocation7 [shape = 'u8[4096]{0}', space=vmem, size = 0x1000, scoped, tag = 'output window, operand 0, single buffered']
    %7 = vsyncpa [#allocation3], 0
    %8 = vsyncpa [#allocation6], 0
    %9 = vsyncpa [#allocation4], 0
    // Predicated region
    $region2: #{tpu_custom_call.1} parent=1 // pred_check
      _
    $region3: #{tpu_custom_call.1} parent=1 // pred_check_branch
      %11 = sbr.rel (0) target = $region5
    $region4: #{tpu_custom_call.1} parent=1 // pred_region
      %13 = vsyncadd [#allocation3], 0
      %s14 = sshll.u32 %s0, 4
      %s15 = int_to_ptr.hbm [resolvable:$true] %s14
      %s16 = sshll.u32 [#allocation2], 4
      %s17 = int_to_ptr.vmem [resolvable:$true] %s16
      %22 = dma.hbm_to_vmem [thread:$0]  %s15, 256, %s17, [#allocation3], 128, 128, 8
    $region5: #{tpu_custom_call.1} parent=1 // pred_fallthru
      _
    // Predicated region
    $region6: #{tpu_custom_call.1} parent=1 // pred_check
      _
    $region7: #{tpu_custom_call.1} parent=1 // pred_check_branch
      %24 = sbr.rel (0) target = $region9
    $region8: #{tpu_custom_call.1} parent=1 // pred_region
      %26 = vsyncadd [#allocation6], 0
      %s27 = sshll.u32 %s1, 4
      %s28 = int_to_ptr.hbm [resolvable:$true] %s27
      %s29 = sshll.u32 [#allocation5], 4
      %s30 = int_to_ptr.vmem [resolvable:$true] %s29
      %35 = dma.hbm_to_vmem [thread:$0]  %s28, 256, %s30, [#allocation6], 128, 128, 8
    $region9: #{tpu_custom_call.1} parent=1 // pred_fallthru
      _
    // Predicated region
    $region10: #{tpu_custom_call.1} parent=1 // pred_check
      _
    $region11: #{tpu_custom_call.1} parent=1 // pred_check_branch
      %37 = sbr.rel (0) target = $region13
    $region12: #{tpu_custom_call.1} parent=1 // pred_region
      %39 = dma.done [#allocation3], 256
    $region13: #{tpu_custom_call.1} parent=1 // pred_fallthru
      _
    // Predicated region
    $region14: #{tpu_custom_call.1} parent=1 // pred_check
      _
    $region15: #{tpu_custom_call.1} parent=1 // pred_check_branch
      %41 = sbr.rel (0) target = $region17
    $region16: #{tpu_custom_call.1} parent=1 // pred_region
      %43 = dma.done [#allocation6], 256
    $region17: #{tpu_custom_call.1} parent=1 // pred_fallthru
      _
    %v44 = vld [vmem:[#allocation2] sm:$0xff]
    %v45 = vld [vmem:[#allocation2 + $0x8] sm:$0x3]
    %v46 = vxor.u32 %v44, 2147483648
    %v47 = vxor.u32 %v45, 2147483648
    %v48 = vmul.f32 %v46, 1.442695
    %v49 = vpow.pop %v48
    %v50 = vmul.f32 %v47, 1.442695
    %v51 = vpow.pop %v50
    %v52 = vadd.f32 %v49, 1.0
    %v53 = vadd.f32 %v51, 1.0
    %v54 = vrcp.pop %v52
    %v55 = vmul.f32 %v52, %v54
    %v56 = vsub.f32 1.0, %v55
    %v57 = vmul.f32 %v54, %v56
    %v58 = vadd.f32 %v54, %v57
    %vm59 = vweird.f32 %v52
    %vm60 = vweird.f32 %v54
    %vm61 = vmor %vm59, %vm60
    %v62 = vsel %vm61, %v54, %v58
    %v63 = vand.u32 2147483647, %v52
    %vm64 = vcmp.eq.f32.partialorder %v63, 8.507059e+37
    %v65 = vand.u32 %v52, 2147483648
    %v66 = vor.u32 1.1754944e-38, %v65
    %v67 = vsel %vm64, %v66, %v62
    %v68 = vmul.f32 1.0, %v67
    %v69 = vrcp.pop %v53
    %v70 = vmul.f32 %v53, %v69
    %v71 = vsub.f32 1.0, %v70
    %v72 = vmul.f32 %v69, %v71
    %v73 = vadd.f32 %v69, %v72
    %vm74 = vweird.f32 %v53
    %vm75 = vweird.f32 %v69
    %vm76 = vmor %vm74, %vm75
    %v77 = vsel %vm76, %v69, %v73
    %v78 = vand.u32 2147483647, %v53
    %vm79 = vcmp.eq.f32.partialorder %v78, 8.507059e+37
    %v80 = vand.u32 %v53, 2147483648
    %v81 = vor.u32 1.1754944e-38, %v80
    %v82 = vsel %vm79, %v81, %v77
    %v83 = vmul.f32 1.0, %v82
    %v84 = vld [vmem:[#allocation5] sm:$0xff]
    %v85 = vld [vmem:[#allocation5 + $0x8] sm:$0x3]
    %v86 = vmul.f32 %v68, %v84
    %v87 = vmul.f32 %v83, %v85
    %vm88 = vcmask 695296
    %v89 = vsel %vm88, %v86, 0.0
    %90 = vadd.xlane.f32.xlu0 %v89
    %v91 = vpop.xlane.xlu0 %90
    %vm92 = vcmask 689152
    %v93 = vsel %vm92, %v87, 0.0
    %94 = vadd.xlane.f32.xlu0 %v93
    %v95 = vpop.xlane.xlu0 %94
    %v96 = vsel %vm88, %v68, 0.0
    %97 = vadd.xlane.f32.xlu0 %v96
    %v98 = vpop.xlane.xlu0 %97
    %v99 = vsel %vm92, %v83, 0.0
    %100 = vadd.xlane.f32.xlu0 %v99
    %v101 = vpop.xlane.xlu0 %100
    %v102 = vsel %vm88, %v84, 0.0
    %103 = vadd.xlane.f32.xlu0 %v102
    %v104 = vpop.xlane.xlu0 %103
    %v105 = vsel %vm92, %v85, 0.0
    %106 = vadd.xlane.f32.xlu0 %v105
    %v107 = vpop.xlane.xlu0 %106
    %v108 = vadd.f32 %v98, %v104
    %v109 = vadd.f32 %v101, %v107
    %v110 = vsub.f32 %v108, %v91
    %v111 = vsub.f32 %v109, %v95
    %v112 = vadd.f32 %v91, 1e-07
    %v113 = vadd.f32 %v95, 1e-07
    %v114 = vadd.f32 %v110, 1e-07
    %v115 = vadd.f32 %v111, 1e-07
    %v116 = vrcp.pop %v114
    %v117 = vmul.f32 %v114, %v116
    %v118 = vsub.f32 1.0, %v117
    %v119 = vmul.f32 %v116, %v118
    %v120 = vadd.f32 %v116, %v119
    %vm121 = vweird.f32 %v114
    %vm122 = vweird.f32 %v116
    %vm123 = vmor %vm121, %vm122
    %v124 = vsel %vm123, %v116, %v120
    %v125 = vand.u32 2147483647, %v114
    %vm126 = vcmp.eq.f32.partialorder %v125, 8.507059e+37
    %v127 = vand.u32 %v114, 2147483648
    %v128 = vor.u32 1.1754944e-38, %v127
    %v129 = vsel %vm126, %v128, %v124
    %v130 = vmul.f32 %v112, %v129
    %v131 = vrcp.pop %v115
    %v132 = vmul.f32 %v115, %v131
    %v133 = vsub.f32 1.0, %v132
    %v134 = vmul.f32 %v131, %v133
    %v135 = vadd.f32 %v131, %v134
    %vm136 = vweird.f32 %v115
    %vm137 = vweird.f32 %v131
    %vm138 = vmor %vm136, %vm137
    %v139 = vsel %vm138, %v131, %v135
    %v140 = vand.u32 2147483647, %v115
    %vm141 = vcmp.eq.f32.partialorder %v140, 8.507059e+37
    %v142 = vand.u32 %v115, 2147483648
    %v143 = vor.u32 1.1754944e-38, %v142
    %v144 = vsel %vm141, %v143, %v139
    %v145 = vmul.f32 %v113, %v144
    %v146 = vsub.f32 1.0, %v130
    %v147 = vsub.f32 1.0, %v145
    %vm148 = vcmask 7168
    %v149 = vsel %vm148, %v146, 0.0
    %vm150 = vcmask 1024
    %v151 = vsel %vm150, %v147, 0.0
    %v152 = vadd.f32 %v149, %v151
    %153 = vadd.xlane.f32.xlu0 %v152
    %v154 = vpop.xlane.xlu0 %153
    %v155 = vrot.slane %v154, 4
    %v156 = vadd.f32 %v154, %v155
    %v157 = vrot.slane %v156, 2
    %v158 = vadd.f32 %v156, %v157
    %v159 = vrot.slane %v158, 1
    %v160 = vadd.f32 %v158, %v159
    %s161 = vtos %v160
    %v162 = vstv %s161
    %163 = vst [vmem:[#allocation7] sm:$0xff] %v162
    // Predicated region
    $region18: #{tpu_custom_call.1} parent=1 // pred_check
      _
    $region19: #{tpu_custom_call.1} parent=1 // pred_check_branch
      %165 = sbr.rel (0) target = $region21
    $region20: #{tpu_custom_call.1} parent=1 // pred_region
      %167 = vsyncadd [#allocation4], 0
      %s169 = sshll.u32 [#allocation7], 4
      %s170 = int_to_ptr.vmem [resolvable:$true] %s169
      %s171 = sshll.u32 %s2, 4
      %s172 = int_to_ptr.hbm [resolvable:$true] %s171
      %174 = dma.vmem_to_hbm [thread:$0]  %s170, 128, %s172, [#allocation4]
    $region21: #{tpu_custom_call.1} parent=1 // pred_fallthru
      _
    // Predicated region
    $region22: #{tpu_custom_call.1} parent=1 // pred_check
      _
    $region23: #{tpu_custom_call.1} parent=1 // pred_check_branch
      %176 = sbr.rel (0) target = $region25
    $region24: #{tpu_custom_call.1} parent=1 // pred_region
      %178 = dma.done [#allocation4], 128
    $region25: #{tpu_custom_call.1} parent=1 // pred_fallthru
      _
    %179 = vsyncpa [#allocation3], 1
    %180 = vsyncpa [#allocation6], 1
    %181 = vsyncpa [#allocation4], 1

</llo_original>
